<compile_context>
chip_gen: v7x
topology: tpu7x:2x2x1
jax: 0.10.0
libtpu: 0.0.40
codegen_flags: <defaults>
</compile_context>

<pallas_src>
import functools

import jax
import jax.numpy as jnp
from jax.experimental import pallas as pl
from jax.experimental.pallas import tpu as pltpu

LANE = 128  # TPU lane width.


def _round_up(x, m):
    return (x + m - 1) // m * m


def _dqn_kernel(x_ref,
                w1_ref, b1_ref,
                w2_ref, b2_ref,
                w3_ref, b3_ref,
                w4_ref, b4_ref,
                o_ref):
    # ---- fc1 + ReLU: in_features is tiny (4), so use VPU broadcast-FMAs in
    # f32 instead of a K-padded MXU matmul.  x tile is (tm, in_features).
    x = x_ref[...]                          # (tm, in) f32
    w1 = w1_ref[...]                        # (in, 256) f32
    h = jnp.zeros((x.shape[0], w1.shape[1]), jnp.float32)
    for k in range(w1_ref.shape[0]):        # static trip count == in_features
        h = h + x[:, k:k + 1] * w1[k:k + 1, :]
    h = jnp.maximum(h + b1_ref[...], 0.0)

    # ---- fc2 + ReLU: bf16 operands on the MXU, f32 accumulation.
    h = jnp.dot(h.astype(jnp.bfloat16), w2_ref[...],
                preferred_element_type=jnp.float32)
    h = jnp.maximum(h + b2_ref[...], 0.0)

    # ---- fc3 + ReLU (out dim zero-padded 64 -> 128; padded cols stay 0).
    h = jnp.dot(h.astype(jnp.bfloat16), w3_ref[...],
                preferred_element_type=jnp.float32)
    h = jnp.maximum(h + b3_ref[...], 0.0)

    # ---- fc4 (no activation); narrow num_actions-wide output store.
    h = jnp.dot(h.astype(jnp.bfloat16), w4_ref[...],
                preferred_element_type=jnp.float32)
    o_ref[...] = (h + b4_ref[...]).astype(o_ref.dtype)


def _prepare_params(params):
    """Cast weights for native-rate MXU and zero-pad the 64-wide hidden to 128.

    Zero padding is mathematically neutral: padded fc3 output columns are
    ReLU(0 + 0) = 0 and the matching padded fc4 rows are 0.
    """
    w1 = params["w1"].astype(jnp.float32)            # (in, 256), stays f32 (VPU FMA)
    b1 = params["b1"].astype(jnp.float32)
    w2 = params["w2"].astype(jnp.bfloat16)           # (256, 128)
    b2 = params["b2"].astype(jnp.float32)

    w3 = params["w3"]                                # (128, 64)
    h3_in, h3_out = w3.shape
    h3_out_p = _round_up(h3_out, LANE)
    w3p = jnp.zeros((h3_in, h3_out_p), jnp.bfloat16).at[:, :h3_out].set(
        w3.astype(jnp.bfloat16))
    b3p = jnp.zeros((1, h3_out_p), jnp.float32).at[:, :h3_out].set(
        params["b3"].astype(jnp.float32))

    w4 = params["w4"]                                # (64, num_actions)
    w4p = jnp.zeros((h3_out_p, w4.shape[1]), jnp.bfloat16).at[:h3_out, :].set(
        w4.astype(jnp.bfloat16))
    b4 = params["b4"].astype(jnp.float32)
    return w1, b1, w2, b2, w3p, b3p, w4p, b4


def _pick_tm(batch, tm_target):
    """Large tiles amortize per-grid-step overhead; keep >= 2 tiles when the
    batch allows so both v7x TensorCores get work ("parallel" grid axis)."""
    cap = max(LANE, _round_up(batch, 2 * LANE) // 2)   # multiple of 128, ~B/2
    return min(_round_up(tm_target, LANE), cap)


@functools.partial(jax.jit, static_argnames=("tm_target",))
def dqn_ram_forward(x, params, *, tm_target=1024):
    """x: (B, in_features) f32. params: dict of (in,out) weights, (1,out) biases.

    Returns (B, num_actions) f32, matching the PyTorch DQN_RAM forward
    (bf16 MXU operands with f32 accumulation; ~1e-2 relative).
    """
    B, in_features = x.shape
    num_actions = params["w4"].shape[1]

    x = x.astype(jnp.float32)
    w1, b1, w2, b2, w3, b3, w4, b4 = _prepare_params(params)

    tm = _pick_tm(B, tm_target)
    grid = (pl.cdiv(B, tm),)          # partial last block; OOB rows dropped

    const = lambda i: (0, 0)          # weights/biases resident across steps
    in_specs = [
        pl.BlockSpec((tm, in_features), lambda i: (i, 0)),   # x, unpadded
        pl.BlockSpec(w1.shape, const), pl.BlockSpec(b1.shape, const),
        pl.BlockSpec(w2.shape, const), pl.BlockSpec(b2.shape, const),
        pl.BlockSpec(w3.shape, const), pl.BlockSpec(b3.shape, const),
        pl.BlockSpec(w4.shape, const), pl.BlockSpec(b4.shape, const),
    ]

    out = pl.pallas_call(
        _dqn_kernel,
        out_shape=jax.ShapeDtypeStruct((B, num_actions), jnp.float32),
        grid_spec=pltpu.PrefetchScalarGridSpec(
            num_scalar_prefetch=0,
            grid=grid,
            in_specs=in_specs,
            out_specs=pl.BlockSpec((tm, num_actions), lambda i: (i, 0)),
        ),
        compiler_params=pltpu.CompilerParams(
            dimension_semantics=("parallel",),
        ),
    )(x, w1, b1, w2, b2, w3, b3, w4, b4)

    return out


def init_params(key, in_features=4, num_actions=18):
    """Deterministic synthetic init (uniform +-1/sqrt(fan_in), like nn.Linear)."""
    dims = [in_features, 256, 128, 64, num_actions]
    params = {}
    for i in range(4):
        fan_in, fan_out = dims[i], dims[i + 1]
        key, kw, kb = jax.random.split(key, 3)
        bound = 1.0 / jnp.sqrt(jnp.float32(fan_in))
        # stored as (in, out) == transposed PyTorch (out, in)
        params[f"w{i+1}"] = jax.random.uniform(
            kw, (fan_in, fan_out), jnp.float32, -bound, bound)
        params[f"b{i+1}"] = jax.random.uniform(
            kb, (1, fan_out), jnp.float32, -bound, bound)
    return params


def _reference(x, params):
    h = jnp.maximum(x @ params["w1"] + params["b1"], 0.0)
    h = jnp.maximum(h @ params["w2"] + params["b2"], 0.0)
    h = jnp.maximum(h @ params["w3"] + params["b3"], 0.0)
    return h @ params["w4"] + params["b4"]


if __name__ == "__main__":
    key = jax.random.PRNGKey(0)
    key, kx, kx_big = jax.random.split(key, 3)

    in_features, num_actions = 4, 18
    params = init_params(key, in_features, num_actions)

    # Small-batch check (matches the module's typical usage).
    x = jax.random.normal(kx, (2, in_features), jnp.float32)
    out = jax.block_until_ready(dqn_ram_forward(x, params))
    ref = _reference(x, params)
    assert out.shape == (2, num_actions)
    # bf16 MXU operands (f32 accumulation) -> loosened tolerance vs f32 ref.
    assert jnp.allclose(out, ref, atol=5e-2, rtol=5e-2), (
        float(jnp.max(jnp.abs(out - ref))))

    # Odd larger batch: multi-tile "parallel" grid + partial last block.
    x_big = jax.random.normal(kx_big, (500, in_features), jnp.float32)
    out_big = jax.block_until_ready(dqn_ram_forward(x_big, params))
    ref_big = _reference(x_big, params)
    assert out_big.shape == (500, num_actions)
    assert jnp.allclose(out_big, ref_big, atol=5e-2, rtol=5e-2), (
        float(jnp.max(jnp.abs(out_big - ref_big))))

    print("KERNEL_OK")
</pallas_src>

<mosaic_0001>
module attributes {stable_mosaic.version = 11 : i64} {
  func.func @_dqn_kernel(%arg0: i32, %arg1: memref<128x4xf32, #tpu.memory_space<vmem>>, %arg2: memref<4x256xf32, #tpu.memory_space<vmem>>, %arg3: memref<1x256xf32, #tpu.memory_space<vmem>>, %arg4: memref<256x128xbf16, #tpu.memory_space<vmem>>, %arg5: memref<1x128xf32, #tpu.memory_space<vmem>>, %arg6: memref<128x128xbf16, #tpu.memory_space<vmem>>, %arg7: memref<1x128xf32, #tpu.memory_space<vmem>>, %arg8: memref<128x18xbf16, #tpu.memory_space<vmem>>, %arg9: memref<1x18xf32, #tpu.memory_space<vmem>>, %arg10: memref<128x18xf32, #tpu.memory_space<vmem>>) attributes {dimension_semantics = [#tpu.dimension_semantics<parallel>], iteration_bounds = array<i64: 1>, scalar_prefetch = 0 : i64, scratch_operands = 0 : i64, tpu.core_type = #tpu.core_type<tc>, window_params = [{transform_indices = @transform_0, window_bounds = array<i64: 128, 4>}, {pipeline_mode = #tpu.pipeline_mode<synchronous>, transform_indices = @transform_1, window_bounds = array<i64: 4, 256>}, {pipeline_mode = #tpu.pipeline_mode<synchronous>, transform_indices = @transform_2, window_bounds = array<i64: 1, 256>}, {pipeline_mode = #tpu.pipeline_mode<synchronous>, transform_indices = @transform_3, window_bounds = array<i64: 256, 128>}, {pipeline_mode = #tpu.pipeline_mode<synchronous>, transform_indices = @transform_4, window_bounds = array<i64: 1, 128>}, {pipeline_mode = #tpu.pipeline_mode<synchronous>, transform_indices = @transform_5, window_bounds = array<i64: 128, 128>}, {pipeline_mode = #tpu.pipeline_mode<synchronous>, transform_indices = @transform_6, window_bounds = array<i64: 1, 128>}, {pipeline_mode = #tpu.pipeline_mode<synchronous>, transform_indices = @transform_7, window_bounds = array<i64: 128, 18>}, {pipeline_mode = #tpu.pipeline_mode<synchronous>, transform_indices = @transform_8, window_bounds = array<i64: 1, 18>}, {transform_indices = @transform_9, window_bounds = array<i64: 128, 18>}]} {
    %c0 = arith.constant 0 : index
    %c0_0 = arith.constant 0 : index
    %0 = vector.load %arg1[%c0, %c0_0] : memref<128x4xf32, #tpu.memory_space<vmem>>, vector<128x4xf32>
    %c0_1 = arith.constant 0 : index
    %c0_2 = arith.constant 0 : index
    %1 = vector.load %arg2[%c0_1, %c0_2] : memref<4x256xf32, #tpu.memory_space<vmem>>, vector<4x256xf32>
    %cst = arith.constant 0.000000e+00 : f32
    %2 = vector.broadcast %cst : f32 to vector<128x256xf32>
    %3 = vector.extract_strided_slice %0 {offsets = [0, 0], sizes = [128, 1], strides = [1, 1]} : vector<128x4xf32> to vector<128x1xf32>
    %4 = vector.extract_strided_slice %1 {offsets = [0, 0], sizes = [1, 256], strides = [1, 1]} : vector<4x256xf32> to vector<1x256xf32>
    %5 = vector.broadcast %3 : vector<128x1xf32> to vector<128x256xf32>
    %6 = vector.broadcast %4 : vector<1x256xf32> to vector<128x256xf32>
    %7 = arith.mulf %5, %6 : vector<128x256xf32>
    %8 = arith.addf %2, %7 : vector<128x256xf32>
    %9 = vector.extract_strided_slice %0 {offsets = [0, 1], sizes = [128, 1], strides = [1, 1]} : vector<128x4xf32> to vector<128x1xf32>
    %10 = vector.extract_strided_slice %1 {offsets = [1, 0], sizes = [1, 256], strides = [1, 1]} : vector<4x256xf32> to vector<1x256xf32>
    %11 = vector.broadcast %9 : vector<128x1xf32> to vector<128x256xf32>
    %12 = vector.broadcast %10 : vector<1x256xf32> to vector<128x256xf32>
    %13 = arith.mulf %11, %12 : vector<128x256xf32>
    %14 = arith.addf %8, %13 : vector<128x256xf32>
    %15 = vector.extract_strided_slice %0 {offsets = [0, 2], sizes = [128, 1], strides = [1, 1]} : vector<128x4xf32> to vector<128x1xf32>
    %16 = vector.extract_strided_slice %1 {offsets = [2, 0], sizes = [1, 256], strides = [1, 1]} : vector<4x256xf32> to vector<1x256xf32>
    %17 = vector.broadcast %15 : vector<128x1xf32> to vector<128x256xf32>
    %18 = vector.broadcast %16 : vector<1x256xf32> to vector<128x256xf32>
    %19 = arith.mulf %17, %18 : vector<128x256xf32>
    %20 = arith.addf %14, %19 : vector<128x256xf32>
    %21 = vector.extract_strided_slice %0 {offsets = [0, 3], sizes = [128, 1], strides = [1, 1]} : vector<128x4xf32> to vector<128x1xf32>
    %22 = vector.extract_strided_slice %1 {offsets = [3, 0], sizes = [1, 256], strides = [1, 1]} : vector<4x256xf32> to vector<1x256xf32>
    %23 = vector.broadcast %21 : vector<128x1xf32> to vector<128x256xf32>
    %24 = vector.broadcast %22 : vector<1x256xf32> to vector<128x256xf32>
    %25 = arith.mulf %23, %24 : vector<128x256xf32>
    %26 = arith.addf %20, %25 : vector<128x256xf32>
    %c0_3 = arith.constant 0 : index
    %c0_4 = arith.constant 0 : index
    %27 = vector.load %arg3[%c0_3, %c0_4] : memref<1x256xf32, #tpu.memory_space<vmem>>, vector<1x256xf32>
    %28 = vector.broadcast %27 : vector<1x256xf32> to vector<128x256xf32>
    %29 = arith.addf %26, %28 : vector<128x256xf32>
    %cst_5 = arith.constant 0.000000e+00 : f32
    %30 = vector.broadcast %cst_5 : f32 to vector<128x256xf32>
    %31 = arith.maximumf %29, %30 : vector<128x256xf32>
    %32 = arith.truncf %31 : vector<128x256xf32> to vector<128x256xbf16>
    %c0_6 = arith.constant 0 : index
    %c0_7 = arith.constant 0 : index
    %33 = vector.load %arg4[%c0_6, %c0_7] : memref<256x128xbf16, #tpu.memory_space<vmem>>, vector<256x128xbf16>
    %cst_8 = arith.constant dense<0.000000e+00> : vector<128x128xf32>
    %34 = tpu.matmul %32, %33, %cst_8 {dimension_numbers = #tpu.dot_dimension_numbers<[1], [0], [0], [1], [0, 0, 1, 1], [], []>} : vector<128x256xbf16>, vector<256x128xbf16>, vector<128x128xf32> -> vector<128x128xf32>
    %c0_9 = arith.constant 0 : index
    %c0_10 = arith.constant 0 : index
    %35 = vector.load %arg5[%c0_9, %c0_10] : memref<1x128xf32, #tpu.memory_space<vmem>>, vector<1x128xf32>
    %36 = vector.broadcast %35 : vector<1x128xf32> to vector<128x128xf32>
    %37 = arith.addf %34, %36 : vector<128x128xf32>
    %cst_11 = arith.constant 0.000000e+00 : f32
    %38 = vector.broadcast %cst_11 : f32 to vector<128x128xf32>
    %39 = arith.maximumf %37, %38 : vector<128x128xf32>
    %40 = arith.truncf %39 : vector<128x128xf32> to vector<128x128xbf16>
    %c0_12 = arith.constant 0 : index
    %c0_13 = arith.constant 0 : index
    %41 = vector.load %arg6[%c0_12, %c0_13] : memref<128x128xbf16, #tpu.memory_space<vmem>>, vector<128x128xbf16>
    %cst_14 = arith.constant dense<0.000000e+00> : vector<128x128xf32>
    %42 = tpu.matmul %40, %41, %cst_14 {dimension_numbers = #tpu.dot_dimension_numbers<[1], [0], [0], [1], [0, 0, 1, 1], [], []>} : vector<128x128xbf16>, vector<128x128xbf16>, vector<128x128xf32> -> vector<128x128xf32>
    %c0_15 = arith.constant 0 : index
    %c0_16 = arith.constant 0 : index
    %43 = vector.load %arg7[%c0_15, %c0_16] : memref<1x128xf32, #tpu.memory_space<vmem>>, vector<1x128xf32>
    %44 = vector.broadcast %43 : vector<1x128xf32> to vector<128x128xf32>
    %45 = arith.addf %42, %44 : vector<128x128xf32>
    %cst_17 = arith.constant 0.000000e+00 : f32
    %46 = vector.broadcast %cst_17 : f32 to vector<128x128xf32>
    %47 = arith.maximumf %45, %46 : vector<128x128xf32>
    %48 = arith.truncf %47 : vector<128x128xf32> to vector<128x128xbf16>
    %c0_18 = arith.constant 0 : index
    %c0_19 = arith.constant 0 : index
    %49 = vector.load %arg8[%c0_18, %c0_19] : memref<128x18xbf16, #tpu.memory_space<vmem>>, vector<128x18xbf16>
    %cst_20 = arith.constant dense<0.000000e+00> : vector<128x18xf32>
    %50 = tpu.matmul %48, %49, %cst_20 {dimension_numbers = #tpu.dot_dimension_numbers<[1], [0], [0], [1], [0, 0, 1, 1], [], []>} : vector<128x128xbf16>, vector<128x18xbf16>, vector<128x18xf32> -> vector<128x18xf32>
    %c0_21 = arith.constant 0 : index
    %c0_22 = arith.constant 0 : index
    %51 = vector.load %arg9[%c0_21, %c0_22] : memref<1x18xf32, #tpu.memory_space<vmem>>, vector<1x18xf32>
    %52 = vector.broadcast %51 : vector<1x18xf32> to vector<128x18xf32>
    %53 = arith.addf %50, %52 : vector<128x18xf32>
    %c0_23 = arith.constant 0 : index
    %c0_24 = arith.constant 0 : index
    %54 = vector.load %arg10[%c0_23, %c0_24] : memref<128x18xf32, #tpu.memory_space<vmem>>, vector<128x18xf32>
    tpu.vector_store %arg10[%c0_23, %c0_24], %53 {strides = array<i32>} : memref<128x18xf32, #tpu.memory_space<vmem>>, vector<128x18xf32>,
    return
  }
  func.func @transform_0(%arg0: i32) -> (i32, i32) {
    %c0_i32 = arith.constant 0 : i32
    %c0_i32_0 = arith.constant 0 : i32
    return %arg0, %c0_i32 : i32, i32
  }
  func.func @transform_1(%arg0: i32) -> (i32, i32) {
    %c0_i32 = arith.constant 0 : i32
    %c0_i32_0 = arith.constant 0 : i32
    %c0_i32_1 = arith.constant 0 : i32
    return %c0_i32, %c0_i32_0 : i32, i32
  }
  func.func @transform_2(%arg0: i32) -> (i32, i32) {
    %c0_i32 = arith.constant 0 : i32
    %c0_i32_0 = arith.constant 0 : i32
    %c0_i32_1 = arith.constant 0 : i32
    return %c0_i32, %c0_i32_0 : i32, i32
  }
  func.func @transform_3(%arg0: i32) -> (i32, i32) {
    %c0_i32 = arith.constant 0 : i32
    %c0_i32_0 = arith.constant 0 : i32
    %c0_i32_1 = arith.constant 0 : i32
    return %c0_i32, %c0_i32_0 : i32, i32
  }
  func.func @transform_4(%arg0: i32) -> (i32, i32) {
    %c0_i32 = arith.constant 0 : i32
    %c0_i32_0 = arith.constant 0 : i32
    %c0_i32_1 = arith.constant 0 : i32
    return %c0_i32, %c0_i32_0 : i32, i32
  }
  func.func @transform_5(%arg0: i32) -> (i32, i32) {
    %c0_i32 = arith.constant 0 : i32
    %c0_i32_0 = arith.constant 0 : i32
    %c0_i32_1 = arith.constant 0 : i32
    return %c0_i32, %c0_i32_0 : i32, i32
  }
  func.func @transform_6(%arg0: i32) -> (i32, i32) {
    %c0_i32 = arith.constant 0 : i32
    %c0_i32_0 = arith.constant 0 : i32
    %c0_i32_1 = arith.constant 0 : i32
    return %c0_i32, %c0_i32_0 : i32, i32
  }
  func.func @transform_7(%arg0: i32) -> (i32, i32) {
    %c0_i32 = arith.constant 0 : i32
    %c0_i32_0 = arith.constant 0 : i32
    %c0_i32_1 = arith.constant 0 : i32
    return %c0_i32, %c0_i32_0 : i32, i32
  }
  func.func @transform_8(%arg0: i32) -> (i32, i32) {
    %c0_i32 = arith.constant 0 : i32
    %c0_i32_0 = arith.constant 0 : i32
    %c0_i32_1 = arith.constant 0 : i32
    return %c0_i32, %c0_i32_0 : i32, i32
  }
  func.func @transform_9(%arg0: i32) -> (i32, i32) {
    %c0_i32 = arith.constant 0 : i32
    %c0_i32_0 = arith.constant 0 : i32
    return %arg0, %c0_i32 : i32, i32
  }
}

</mosaic_0001>

<llo_original>
// kernel: dqn_ram_forward.1
$region0: #{dqn_ram_forward.1}
  #allocation0 [shape = 'u32[]', space=smem, size = 0x4, offset = 0x4, fixed_abs, tag = 'smem constant byte address 0x4 - core index']
  #allocation1 [shape = 'u32[144,128]{1,0:T(1,128)}', space=vmem, size = 0x12000, scoped, tag = 'internal scratch']
  %s0 = inlined_call_operand.vmem [shape: f32[2,4], index: 0, kind: input, shape index: {}]
  %s1 = inlined_call_operand.vmem [shape: f32[4,256], index: 1, kind: input, shape index: {}]
  %s2 = inlined_call_operand.vmem [shape: f32[1,256], index: 2, kind: input, shape index: {}]
  %s3 = inlined_call_operand.vmem [shape: bf16[256,128], index: 3, kind: input, shape index: {}]
  %s4 = inlined_call_operand.vmem [shape: f32[1,128], index: 4, kind: input, shape index: {}]
  %s5 = inlined_call_operand.vmem [shape: bf16[128,128], index: 5, kind: input, shape index: {}]
  %s6 = inlined_call_operand.vmem [shape: f32[1,128], index: 6, kind: input, shape index: {}]
  %s7 = inlined_call_operand.vmem [shape: bf16[128,18], index: 7, kind: input, shape index: {}]
  %s8 = inlined_call_operand.vmem [shape: f32[1,18], index: 8, kind: input, shape index: {}]
  %s9 = inlined_call_operand.hbm [shape: f32[2,18], index: 9, kind: output, shape index: {}]
  %s10 = sld [smem:[#allocation0]]
  $region46: #{dqn_ram_forward.1} parent=0
    _
  %s12 = ssub.s32 1, %s10
  %s13 = scalar_select 0, %s12, %s10
  $region1: #{dqn_ram_forward.1} parent=0
    #allocation2 [shape = 'u8[65536]{0}', space=vmem, size = 0x10000, scoped, tag = 'output window, operand 0, single buffered']
    #allocation3 [shape = 's32[1]{0}', space=sflag, size = 0x4, scoped, tag = 'scoped memory for dqn_ram_forward.1']
    %14 = vsyncpa [#allocation3], 0
    // Predicated region
    $region2: #{dqn_ram_forward.1} parent=1 // pred_check
      _
    $region3: #{dqn_ram_forward.1} parent=1 // pred_check_branch
      %16 = sbr.rel (0) target = $region5
    $region4: #{dqn_ram_forward.1} parent=1 // pred_region
      _
    $region5: #{dqn_ram_forward.1} parent=1 // pred_fallthru
      _
    // Predicated region
    $region6: #{dqn_ram_forward.1} parent=1 // pred_check
      _
    $region7: #{dqn_ram_forward.1} parent=1 // pred_check_branch
      %18 = sbr.rel (0) target = $region9
    $region8: #{dqn_ram_forward.1} parent=1 // pred_region
      _
    $region9: #{dqn_ram_forward.1} parent=1 // pred_fallthru
      _
    // Predicated region
    $region10: #{dqn_ram_forward.1} parent=1 // pred_check
      _
    $region11: #{dqn_ram_forward.1} parent=1 // pred_check_branch
      %20 = sbr.rel (0) target = $region13
    $region12: #{dqn_ram_forward.1} parent=1 // pred_region
      _
    $region13: #{dqn_ram_forward.1} parent=1 // pred_fallthru
      _
    // Predicated region
    $region14: #{dqn_ram_forward.1} parent=1 // pred_check
      _
    $region15: #{dqn_ram_forward.1} parent=1 // pred_check_branch
      %22 = sbr.rel (0) target = $region17
    $region16: #{dqn_ram_forward.1} parent=1 // pred_region
      _
    $region17: #{dqn_ram_forward.1} parent=1 // pred_fallthru
      _
    // Predicated region
    $region18: #{dqn_ram_forward.1} parent=1 // pred_check
      _
    $region19: #{dqn_ram_forward.1} parent=1 // pred_check_branch
      %24 = sbr.rel (0) target = $region21
    $region20: #{dqn_ram_forward.1} parent=1 // pred_region
      _
    $region21: #{dqn_ram_forward.1} parent=1 // pred_fallthru
      _
    // Predicated region
    $region22: #{dqn_ram_forward.1} parent=1 // pred_check
      _
    $region23: #{dqn_ram_forward.1} parent=1 // pred_check_branch
      %26 = sbr.rel (0) target = $region25
    $region24: #{dqn_ram_forward.1} parent=1 // pred_region
      _
    $region25: #{dqn_ram_forward.1} parent=1 // pred_fallthru
      _
    // Predicated region
    $region26: #{dqn_ram_forward.1} parent=1 // pred_check
      _
    $region27: #{dqn_ram_forward.1} parent=1 // pred_check_branch
      %28 = sbr.rel (0) target = $region29
    $region28: #{dqn_ram_forward.1} parent=1 // pred_region
      _
    $region29: #{dqn_ram_forward.1} parent=1 // pred_fallthru
      _
    // Predicated region
    $region30: #{dqn_ram_forward.1} parent=1 // pred_check
      _
    $region31: #{dqn_ram_forward.1} parent=1 // pred_check_branch
      %30 = sbr.rel (0) target = $region33
    $region32: #{dqn_ram_forward.1} parent=1 // pred_region
      _
    $region33: #{dqn_ram_forward.1} parent=1 // pred_fallthru
      _
    // Predicated region
    $region34: #{dqn_ram_forward.1} parent=1 // pred_check
      _
    $region35: #{dqn_ram_forward.1} parent=1 // pred_check_branch
      %32 = sbr.rel (0) target = $region37
    $region36: #{dqn_ram_forward.1} parent=1 // pred_region
      _
    $region37: #{dqn_ram_forward.1} parent=1 // pred_fallthru
      _
    %v34 = vld [vmem:[%s0] sm:$0xff]
    %v35 = vld [vmem:[%s0 + $0x8] sm:$0xff]
    %v36 = vld [vmem:[%s0 + $0x10] sm:$0xff]
    %v37 = vld [vmem:[%s0 + $0x18] sm:$0xff]
    %v38 = vld [vmem:[%s0 + $0x20] sm:$0xff]
    %v39 = vld [vmem:[%s0 + $0x28] sm:$0xff]
    %v40 = vld [vmem:[%s0 + $0x30] sm:$0xff]
    %v41 = vld [vmem:[%s0 + $0x38] sm:$0xff]
    %v42 = vld [vmem:[%s0 + $0x40] sm:$0xff]
    %v43 = vld [vmem:[%s0 + $0x48] sm:$0xff]
    %v44 = vld [vmem:[%s0 + $0x50] sm:$0xff]
    %v45 = vld [vmem:[%s0 + $0x58] sm:$0xff]
    %v46 = vld [vmem:[%s0 + $0x60] sm:$0xff]
    %v47 = vld [vmem:[%s0 + $0x68] sm:$0xff]
    %v48 = vld [vmem:[%s0 + $0x70] sm:$0xff]
    %v49 = vld [vmem:[%s0 + $0x78] sm:$0xff]
    %v50 = vld [vmem:[%s1] sm:$0xff]
    %52 = vset.pattern.permute.xlu0 0
    %53 = vperm.xlu0 %52, %v34
    %v54 = vpop.permute.xlu0 %53
    %57 = vset.pattern.permute.xlu0 0
    %58 = vperm.xlu0 %57, %v35
    %v59 = vpop.permute.xlu0 %58
    %62 = vset.pattern.permute.xlu0 0
    %63 = vperm.xlu0 %62, %v36
    %v64 = vpop.permute.xlu0 %63
    %67 = vset.pattern.permute.xlu0 0
    %68 = vperm.xlu0 %67, %v37
    %v69 = vpop.permute.xlu0 %68
    %72 = vset.pattern.permute.xlu0 0
    %73 = vperm.xlu0 %72, %v38
    %v74 = vpop.permute.xlu0 %73
    %77 = vset.pattern.permute.xlu0 0
    %78 = vperm.xlu0 %77, %v39
    %v79 = vpop.permute.xlu0 %78
    %82 = vset.pattern.permute.xlu0 0
    %83 = vperm.xlu0 %82, %v40
    %v84 = vpop.permute.xlu0 %83
    %87 = vset.pattern.permute.xlu0 0
    %88 = vperm.xlu0 %87, %v41
    %v89 = vpop.permute.xlu0 %88
    %92 = vset.pattern.permute.xlu0 0
    %93 = vperm.xlu0 %92, %v42
    %v94 = vpop.permute.xlu0 %93
    %97 = vset.pattern.permute.xlu0 0
    %98 = vperm.xlu0 %97, %v43
    %v99 = vpop.permute.xlu0 %98
    %102 = vset.pattern.permute.xlu0 0
    %103 = vperm.xlu0 %102, %v44
    %v104 = vpop.permute.xlu0 %103
    %107 = vset.pattern.permute.xlu0 0
    %108 = vperm.xlu0 %107, %v45
    %v109 = vpop.permute.xlu0 %108
    %112 = vset.pattern.permute.xlu0 0
    %113 = vperm.xlu0 %112, %v46
    %v114 = vpop.permute.xlu0 %113
    %117 = vset.pattern.permute.xlu0 0
    %118 = vperm.xlu0 %117, %v47
    %v119 = vpop.permute.xlu0 %118
    %122 = vset.pattern.permute.xlu0 0
    %123 = vperm.xlu0 %122, %v48
    %v124 = vpop.permute.xlu0 %123
    %127 = vset.pattern.permute.xlu0 0
    %128 = vperm.xlu0 %127, %v49
    %v129 = vpop.permute.xlu0 %128
    %v132 = vlaneseq
    %v133 = vshrl.u32 %v132, 7
    %v134 = vsub.s32 0, %v133
    %v135 = vrot.slane %v50, %v134
    %v136 = vlaneseq
    %v137 = vshrl.u32 %v136, 7
    %v138 = vsub.s32 4, %v137
    %v139 = vrot.slane %v50, %v138
    %v142 = vlaneseq
    %v143 = vshrl.u32 %v142, 7
    %v144 = vsub.s32 0, %v143
    %v145 = vrot.slane %v135, %v144
    %v146 = vlaneseq
    %v147 = vshrl.u32 %v146, 7
    %v148 = vsub.s32 0, %v147
    %v149 = vrot.slane %v139, %v148
    %v150 = vmul.f32 %v54, %v145
    %v151 = vmul.f32 %v54, %v149
    %v152 = vmul.f32 %v59, %v145
    %v153 = vmul.f32 %v59, %v149
    %v154 = vmul.f32 %v64, %v145
    %v155 = vmul.f32 %v64, %v149
    %v156 = vmul.f32 %v69, %v145
    %v157 = vmul.f32 %v69, %v149
    %v158 = vmul.f32 %v74, %v145
    %v159 = vmul.f32 %v74, %v149
    %v160 = vmul.f32 %v79, %v145
    %v161 = vmul.f32 %v79, %v149
    %v162 = vmul.f32 %v84, %v145
    %v163 = vmul.f32 %v84, %v149
    %v164 = vmul.f32 %v89, %v145
    %v165 = vmul.f32 %v89, %v149
    %v166 = vmul.f32 %v94, %v145
    %v167 = vmul.f32 %v94, %v149
    %v168 = vmul.f32 %v99, %v145
    %v169 = vmul.f32 %v99, %v149
    %v170 = vmul.f32 %v104, %v145
    %v171 = vmul.f32 %v104, %v149
    %v172 = vmul.f32 %v109, %v145
    %v173 = vmul.f32 %v109, %v149
    %v174 = vmul.f32 %v114, %v145
    %v175 = vmul.f32 %v114, %v149
    %v176 = vmul.f32 %v119, %v145
    %v177 = vmul.f32 %v119, %v149
    %v178 = vmul.f32 %v124, %v145
    %v179 = vmul.f32 %v124, %v149
    %v180 = vmul.f32 %v129, %v145
    %v181 = vmul.f32 %v129, %v149
    %v182 = vadd.f32 %v150, 0.0
    %v183 = vadd.f32 %v151, 0.0
    %v184 = vadd.f32 %v152, 0.0
    %v185 = vadd.f32 %v153, 0.0
    %v186 = vadd.f32 %v154, 0.0
    %v187 = vadd.f32 %v155, 0.0
    %v188 = vadd.f32 %v156, 0.0
    %v189 = vadd.f32 %v157, 0.0
    %v190 = vadd.f32 %v158, 0.0
    %v191 = vadd.f32 %v159, 0.0
    %v192 = vadd.f32 %v160, 0.0
    %v193 = vadd.f32 %v161, 0.0
    %v194 = vadd.f32 %v162, 0.0
    %v195 = vadd.f32 %v163, 0.0
    %v196 = vadd.f32 %v164, 0.0
    %v197 = vadd.f32 %v165, 0.0
    %v198 = vadd.f32 %v166, 0.0
    %v199 = vadd.f32 %v167, 0.0
    %v200 = vadd.f32 %v168, 0.0
    %v201 = vadd.f32 %v169, 0.0
    %v202 = vadd.f32 %v170, 0.0
    %v203 = vadd.f32 %v171, 0.0
    %v204 = vadd.f32 %v172, 0.0
    %v205 = vadd.f32 %v173, 0.0
    %v206 = vadd.f32 %v174, 0.0
    %v207 = vadd.f32 %v175, 0.0
    %v208 = vadd.f32 %v176, 0.0
    %v209 = vadd.f32 %v177, 0.0
    %v210 = vadd.f32 %v178, 0.0
    %v211 = vadd.f32 %v179, 0.0
    %v212 = vadd.f32 %v180, 0.0
    %v213 = vadd.f32 %v181, 0.0
    %214 = vset.pattern.permute.xlu0 1
    %215 = vperm.xlu0 %214, %v34
    %v216 = vpop.permute.xlu0 %215
    %218 = vset.pattern.permute.xlu0 1
    %219 = vperm.xlu0 %218, %v35
    %v220 = vpop.permute.xlu0 %219
    %222 = vset.pattern.permute.xlu0 1
    %223 = vperm.xlu0 %222, %v36
    %v224 = vpop.permute.xlu0 %223
    %226 = vset.pattern.permute.xlu0 1
    %227 = vperm.xlu0 %226, %v37
    %v228 = vpop.permute.xlu0 %227
    %230 = vset.pattern.permute.xlu0 1
    %231 = vperm.xlu0 %230, %v38
    %v232 = vpop.permute.xlu0 %231
    %234 = vset.pattern.permute.xlu0 1
    %235 = vperm.xlu0 %234, %v39
    %v236 = vpop.permute.xlu0 %235
    %238 = vset.pattern.permute.xlu0 1
    %239 = vperm.xlu0 %238, %v40
    %v240 = vpop.permute.xlu0 %239
    %242 = vset.pattern.permute.xlu0 1
    %243 = vperm.xlu0 %242, %v41
    %v244 = vpop.permute.xlu0 %243
    %246 = vset.pattern.permute.xlu0 1
    %247 = vperm.xlu0 %246, %v42
    %v248 = vpop.permute.xlu0 %247
    %250 = vset.pattern.permute.xlu0 1
    %251 = vperm.xlu0 %250, %v43
    %v252 = vpop.permute.xlu0 %251
    %254 = vset.pattern.permute.xlu0 1
    %255 = vperm.xlu0 %254, %v44
    %v256 = vpop.permute.xlu0 %255
    %258 = vset.pattern.permute.xlu0 1
    %259 = vperm.xlu0 %258, %v45
    %v260 = vpop.permute.xlu0 %259
    %262 = vset.pattern.permute.xlu0 1
    %263 = vperm.xlu0 %262, %v46
    %v264 = vpop.permute.xlu0 %263
    %266 = vset.pattern.permute.xlu0 1
    %267 = vperm.xlu0 %266, %v47
    %v268 = vpop.permute.xlu0 %267
    %270 = vset.pattern.permute.xlu0 1
    %271 = vperm.xlu0 %270, %v48
    %v272 = vpop.permute.xlu0 %271
    %274 = vset.pattern.permute.xlu0 1
    %275 = vperm.xlu0 %274, %v49
    %v276 = vpop.permute.xlu0 %275
    %v278 = vlaneseq
    %v279 = vshrl.u32 %v278, 7
    %v280 = vsub.s32 1, %v279
    %v281 = vrot.slane %v50, %v280
    %v282 = vlaneseq
    %v283 = vshrl.u32 %v282, 7
    %v284 = vsub.s32 5, %v283
    %v285 = vrot.slane %v50, %v284
    %v288 = vlaneseq
    %v289 = vshrl.u32 %v288, 7
    %v290 = vsub.s32 1, %v289
    %v291 = vrot.slane %v281, %v290
    %v292 = vlaneseq
    %v293 = vshrl.u32 %v292, 7
    %v294 = vsub.s32 1, %v293
    %v295 = vrot.slane %v285, %v294
    %v296 = vmul.f32 %v216, %v291
    %v297 = vmul.f32 %v216, %v295
    %v298 = vmul.f32 %v220, %v291
    %v299 = vmul.f32 %v220, %v295
    %v300 = vmul.f32 %v224, %v291
    %v301 = vmul.f32 %v224, %v295
    %v302 = vmul.f32 %v228, %v291
    %v303 = vmul.f32 %v228, %v295
    %v304 = vmul.f32 %v232, %v291
    %v305 = vmul.f32 %v232, %v295
    %v306 = vmul.f32 %v236, %v291
    %v307 = vmul.f32 %v236, %v295
    %v308 = vmul.f32 %v240, %v291
    %v309 = vmul.f32 %v240, %v295
    %v310 = vmul.f32 %v244, %v291
    %v311 = vmul.f32 %v244, %v295
    %v312 = vmul.f32 %v248, %v291
    %v313 = vmul.f32 %v248, %v295
    %v314 = vmul.f32 %v252, %v291
    %v315 = vmul.f32 %v252, %v295
    %v316 = vmul.f32 %v256, %v291
    %v317 = vmul.f32 %v256, %v295
    %v318 = vmul.f32 %v260, %v291
    %v319 = vmul.f32 %v260, %v295
    %v320 = vmul.f32 %v264, %v291
    %v321 = vmul.f32 %v264, %v295
    %v322 = vmul.f32 %v268, %v291
    %v323 = vmul.f32 %v268, %v295
    %v324 = vmul.f32 %v272, %v291
    %v325 = vmul.f32 %v272, %v295
    %v326 = vmul.f32 %v276, %v291
    %v327 = vmul.f32 %v276, %v295
    %v328 = vadd.f32 %v182, %v296
    %v329 = vadd.f32 %v183, %v297
    %v330 = vadd.f32 %v184, %v298
    %v331 = vadd.f32 %v185, %v299
    %v332 = vadd.f32 %v186, %v300
    %v333 = vadd.f32 %v187, %v301
    %v334 = vadd.f32 %v188, %v302
    %v335 = vadd.f32 %v189, %v303
    %v336 = vadd.f32 %v190, %v304
    %v337 = vadd.f32 %v191, %v305
    %v338 = vadd.f32 %v192, %v306
    %v339 = vadd.f32 %v193, %v307
    %v340 = vadd.f32 %v194, %v308
    %v341 = vadd.f32 %v195, %v309
    %v342 = vadd.f32 %v196, %v310
    %v343 = vadd.f32 %v197, %v311
    %v344 = vadd.f32 %v198, %v312
    %v345 = vadd.f32 %v199, %v313
    %v346 = vadd.f32 %v200, %v314
    %v347 = vadd.f32 %v201, %v315
    %v348 = vadd.f32 %v202, %v316
    %v349 = vadd.f32 %v203, %v317
    %v350 = vadd.f32 %v204, %v318
    %v351 = vadd.f32 %v205, %v319
    %v352 = vadd.f32 %v206, %v320
    %v353 = vadd.f32 %v207, %v321
    %v354 = vadd.f32 %v208, %v322
    %v355 = vadd.f32 %v209, %v323
    %v356 = vadd.f32 %v210, %v324
    %v357 = vadd.f32 %v211, %v325
    %v358 = vadd.f32 %v212, %v326
    %v359 = vadd.f32 %v213, %v327
    %360 = vset.pattern.permute.xlu0 2
    %361 = vperm.xlu0 %360, %v34
    %v362 = vpop.permute.xlu0 %361
    %364 = vset.pattern.permute.xlu0 2
    %365 = vperm.xlu0 %364, %v35
    %v366 = vpop.permute.xlu0 %365
    %368 = vset.pattern.permute.xlu0 2
    %369 = vperm.xlu0 %368, %v36
    %v370 = vpop.permute.xlu0 %369
    %372 = vset.pattern.permute.xlu0 2
    %373 = vperm.xlu0 %372, %v37
    %v374 = vpop.permute.xlu0 %373
    %376 = vset.pattern.permute.xlu0 2
    %377 = vperm.xlu0 %376, %v38
    %v378 = vpop.permute.xlu0 %377
    %380 = vset.pattern.permute.xlu0 2
    %381 = vperm.xlu0 %380, %v39
    %v382 = vpop.permute.xlu0 %381
    %384 = vset.pattern.permute.xlu0 2
    %385 = vperm.xlu0 %384, %v40
    %v386 = vpop.permute.xlu0 %385
    %388 = vset.pattern.permute.xlu0 2
    %389 = vperm.xlu0 %388, %v41
    %v390 = vpop.permute.xlu0 %389
    %392 = vset.pattern.permute.xlu0 2
    %393 = vperm.xlu0 %392, %v42
    %v394 = vpop.permute.xlu0 %393
    %396 = vset.pattern.permute.xlu0 2
    %397 = vperm.xlu0 %396, %v43
    %v398 = vpop.permute.xlu0 %397
    %400 = vset.pattern.permute.xlu0 2
    %401 = vperm.xlu0 %400, %v44
    %v402 = vpop.permute.xlu0 %401
    %404 = vset.pattern.permute.xlu0 2
    %405 = vperm.xlu0 %404, %v45
    %v406 = vpop.permute.xlu0 %405
    %408 = vset.pattern.permute.xlu0 2
    %409 = vperm.xlu0 %408, %v46
    %v410 = vpop.permute.xlu0 %409
    %412 = vset.pattern.permute.xlu0 2
    %413 = vperm.xlu0 %412, %v47
    %v414 = vpop.permute.xlu0 %413
    %416 = vset.pattern.permute.xlu0 2
    %417 = vperm.xlu0 %416, %v48
    %v418 = vpop.permute.xlu0 %417
    %420 = vset.pattern.permute.xlu0 2
    %421 = vperm.xlu0 %420, %v49
    %v422 = vpop.permute.xlu0 %421
    %v424 = vlaneseq
    %v425 = vshrl.u32 %v424, 7
    %v426 = vsub.s32 2, %v425
    %v427 = vrot.slane %v50, %v426
    %v428 = vlaneseq
    %v429 = vshrl.u32 %v428, 7
    %v430 = vsub.s32 6, %v429
    %v431 = vrot.slane %v50, %v430
    %v434 = vlaneseq
    %v435 = vshrl.u32 %v434, 7
    %v436 = vsub.s32 2, %v435
    %v437 = vrot.slane %v427, %v436
    %v438 = vlaneseq
    %v439 = vshrl.u32 %v438, 7
    %v440 = vsub.s32 2, %v439
    %v441 = vrot.slane %v431, %v440
    %v442 = vmul.f32 %v362, %v437
    %v443 = vmul.f32 %v362, %v441
    %v444 = vmul.f32 %v366, %v437
    %v445 = vmul.f32 %v366, %v441
    %v446 = vmul.f32 %v370, %v437
    %v447 = vmul.f32 %v370, %v441
    %v448 = vmul.f32 %v374, %v437
    %v449 = vmul.f32 %v374, %v441
    %v450 = vmul.f32 %v378, %v437
    %v451 = vmul.f32 %v378, %v441
    %v452 = vmul.f32 %v382, %v437
    %v453 = vmul.f32 %v382, %v441
    %v454 = vmul.f32 %v386, %v437
    %v455 = vmul.f32 %v386, %v441
    %v456 = vmul.f32 %v390, %v437
    %v457 = vmul.f32 %v390, %v441
    %v458 = vmul.f32 %v394, %v437
    %v459 = vmul.f32 %v394, %v441
    %v460 = vmul.f32 %v398, %v437
    %v461 = vmul.f32 %v398, %v441
    %v462 = vmul.f32 %v402, %v437
    %v463 = vmul.f32 %v402, %v441
    %v464 = vmul.f32 %v406, %v437
    %v465 = vmul.f32 %v406, %v441
    %v466 = vmul.f32 %v410, %v437
    %v467 = vmul.f32 %v410, %v441
    %v468 = vmul.f32 %v414, %v437
    %v469 = vmul.f32 %v414, %v441
    %v470 = vmul.f32 %v418, %v437
    %v471 = vmul.f32 %v418, %v441
    %v472 = vmul.f32 %v422, %v437
    %v473 = vmul.f32 %v422, %v441
    %v474 = vadd.f32 %v328, %v442
    %v475 = vadd.f32 %v329, %v443
    %v476 = vadd.f32 %v330, %v444
    %v477 = vadd.f32 %v331, %v445
    %v478 = vadd.f32 %v332, %v446
    %v479 = vadd.f32 %v333, %v447
    %v480 = vadd.f32 %v334, %v448
    %v481 = vadd.f32 %v335, %v449
    %v482 = vadd.f32 %v336, %v450
    %v483 = vadd.f32 %v337, %v451
    %v484 = vadd.f32 %v338, %v452
    %v485 = vadd.f32 %v339, %v453
    %v486 = vadd.f32 %v340, %v454
    %v487 = vadd.f32 %v341, %v455
    %v488 = vadd.f32 %v342, %v456
    %v489 = vadd.f32 %v343, %v457
    %v490 = vadd.f32 %v344, %v458
    %v491 = vadd.f32 %v345, %v459
    %v492 = vadd.f32 %v346, %v460
    %v493 = vadd.f32 %v347, %v461
    %v494 = vadd.f32 %v348, %v462
    %v495 = vadd.f32 %v349, %v463
    %v496 = vadd.f32 %v350, %v464
    %v497 = vadd.f32 %v351, %v465
    %v498 = vadd.f32 %v352, %v466
    %v499 = vadd.f32 %v353, %v467
    %v500 = vadd.f32 %v354, %v468
    %v501 = vadd.f32 %v355, %v469
    %v502 = vadd.f32 %v356, %v470
    %v503 = vadd.f32 %v357, %v471
    %v504 = vadd.f32 %v358, %v472
    %v505 = vadd.f32 %v359, %v473
    %506 = vset.pattern.permute.xlu0 3
    %507 = vperm.xlu0 %506, %v34
    %v508 = vpop.permute.xlu0 %507
    %510 = vset.pattern.permute.xlu0 3
    %511 = vperm.xlu0 %510, %v35
    %v512 = vpop.permute.xlu0 %511
    %514 = vset.pattern.permute.xlu0 3
    %515 = vperm.xlu0 %514, %v36
    %v516 = vpop.permute.xlu0 %515
    %518 = vset.pattern.permute.xlu0 3
    %519 = vperm.xlu0 %518, %v37
    %v520 = vpop.permute.xlu0 %519
    %522 = vset.pattern.permute.xlu0 3
    %523 = vperm.xlu0 %522, %v38
    %v524 = vpop.permute.xlu0 %523
    %526 = vset.pattern.permute.xlu0 3
    %527 = vperm.xlu0 %526, %v39
    %v528 = vpop.permute.xlu0 %527
    %530 = vset.pattern.permute.xlu0 3
    %531 = vperm.xlu0 %530, %v40
    %v532 = vpop.permute.xlu0 %531
    %534 = vset.pattern.permute.xlu0 3
    %535 = vperm.xlu0 %534, %v41
    %v536 = vpop.permute.xlu0 %535
    %538 = vset.pattern.permute.xlu0 3
    %539 = vperm.xlu0 %538, %v42
    %v540 = vpop.permute.xlu0 %539
    %542 = vset.pattern.permute.xlu0 3
    %543 = vperm.xlu0 %542, %v43
    %v544 = vpop.permute.xlu0 %543
    %546 = vset.pattern.permute.xlu0 3
    %547 = vperm.xlu0 %546, %v44
    %v548 = vpop.permute.xlu0 %547
    %550 = vset.pattern.permute.xlu0 3
    %551 = vperm.xlu0 %550, %v45
    %v552 = vpop.permute.xlu0 %551
    %554 = vset.pattern.permute.xlu0 3
    %555 = vperm.xlu0 %554, %v46
    %v556 = vpop.permute.xlu0 %555
    %558 = vset.pattern.permute.xlu0 3
    %559 = vperm.xlu0 %558, %v47
    %v560 = vpop.permute.xlu0 %559
    %562 = vset.pattern.permute.xlu0 3
    %563 = vperm.xlu0 %562, %v48
    %v564 = vpop.permute.xlu0 %563
    %566 = vset.pattern.permute.xlu0 3
    %567 = vperm.xlu0 %566, %v49
    %v568 = vpop.permute.xlu0 %567
    %v570 = vlaneseq
    %v571 = vshrl.u32 %v570, 7
    %v572 = vsub.s32 3, %v571
    %v573 = vrot.slane %v50, %v572
    %v574 = vlaneseq
    %v575 = vshrl.u32 %v574, 7
    %v576 = vsub.s32 7, %v575
    %v577 = vrot.slane %v50, %v576
    %v580 = vlaneseq
    %v581 = vshrl.u32 %v580, 7
    %v582 = vsub.s32 3, %v581
    %v583 = vrot.slane %v573, %v582
    %v584 = vlaneseq
    %v585 = vshrl.u32 %v584, 7
    %v586 = vsub.s32 3, %v585
    %v587 = vrot.slane %v577, %v586
    %v588 = vmul.f32 %v508, %v583
    %v589 = vmul.f32 %v508, %v587
    %v590 = vmul.f32 %v512, %v583
    %v591 = vmul.f32 %v512, %v587
    %v592 = vmul.f32 %v516, %v583
    %v593 = vmul.f32 %v516, %v587
    %v594 = vmul.f32 %v520, %v583
    %v595 = vmul.f32 %v520, %v587
    %v596 = vmul.f32 %v524, %v583
    %v597 = vmul.f32 %v524, %v587
    %v598 = vmul.f32 %v528, %v583
    %v599 = vmul.f32 %v528, %v587
    %v600 = vmul.f32 %v532, %v583
    %v601 = vmul.f32 %v532, %v587
    %v602 = vmul.f32 %v536, %v583
    %v603 = vmul.f32 %v536, %v587
    %v604 = vmul.f32 %v540, %v583
    %v605 = vmul.f32 %v540, %v587
    %v606 = vmul.f32 %v544, %v583
    %v607 = vmul.f32 %v544, %v587
    %v608 = vmul.f32 %v548, %v583
    %v609 = vmul.f32 %v548, %v587
    %v610 = vmul.f32 %v552, %v583
    %v611 = vmul.f32 %v552, %v587
    %v612 = vmul.f32 %v556, %v583
    %v613 = vmul.f32 %v556, %v587
    %v614 = vmul.f32 %v560, %v583
    %v615 = vmul.f32 %v560, %v587
    %v616 = vmul.f32 %v564, %v583
    %v617 = vmul.f32 %v564, %v587
    %v618 = vmul.f32 %v568, %v583
    %v619 = vmul.f32 %v568, %v587
    %v620 = vadd.f32 %v474, %v588
    %v621 = vadd.f32 %v475, %v589
    %v622 = vadd.f32 %v476, %v590
    %v623 = vadd.f32 %v477, %v591
    %v624 = vadd.f32 %v478, %v592
    %v625 = vadd.f32 %v479, %v593
    %v626 = vadd.f32 %v480, %v594
    %v627 = vadd.f32 %v481, %v595
    %v628 = vadd.f32 %v482, %v596
    %v629 = vadd.f32 %v483, %v597
    %v630 = vadd.f32 %v484, %v598
    %v631 = vadd.f32 %v485, %v599
    %v632 = vadd.f32 %v486, %v600
    %v633 = vadd.f32 %v487, %v601
    %v634 = vadd.f32 %v488, %v602
    %v635 = vadd.f32 %v489, %v603
    %v636 = vadd.f32 %v490, %v604
    %v637 = vadd.f32 %v491, %v605
    %v638 = vadd.f32 %v492, %v606
    %v639 = vadd.f32 %v493, %v607
    %v640 = vadd.f32 %v494, %v608
    %v641 = vadd.f32 %v495, %v609
    %v642 = vadd.f32 %v496, %v610
    %v643 = vadd.f32 %v497, %v611
    %v644 = vadd.f32 %v498, %v612
    %v645 = vadd.f32 %v499, %v613
    %v646 = vadd.f32 %v500, %v614
    %v647 = vadd.f32 %v501, %v615
    %v648 = vadd.f32 %v502, %v616
    %v649 = vadd.f32 %v503, %v617
    %v650 = vadd.f32 %v504, %v618
    %v651 = vadd.f32 %v505, %v619
    %v652 = vld [vmem:[%s2] sm:$0x3]
    %v654 = vlaneseq
    %v655 = vshrl.u32 %v654, 7
    %v656 = vsub.s32 0, %v655
    %v657 = vrot.slane %v652, %v656
    %v658 = vlaneseq
    %v659 = vshrl.u32 %v658, 7
    %v660 = vsub.s32 1, %v659
    %v661 = vrot.slane %v652, %v660
    %v664 = vadd.f32 %v620, %v657
    %v665 = vadd.f32 %v621, %v661
    %v666 = vadd.f32 %v622, %v657
    %v667 = vadd.f32 %v623, %v661
    %v668 = vadd.f32 %v624, %v657
    %v669 = vadd.f32 %v625, %v661
    %v670 = vadd.f32 %v626, %v657
    %v671 = vadd.f32 %v627, %v661
    %v672 = vadd.f32 %v628, %v657
    %v673 = vadd.f32 %v629, %v661
    %v674 = vadd.f32 %v630, %v657
    %v675 = vadd.f32 %v631, %v661
    %v676 = vadd.f32 %v632, %v657
    %v677 = vadd.f32 %v633, %v661
    %v678 = vadd.f32 %v634, %v657
    %v679 = vadd.f32 %v635, %v661
    %v680 = vadd.f32 %v636, %v657
    %v681 = vadd.f32 %v637, %v661
    %v682 = vadd.f32 %v638, %v657
    %v683 = vadd.f32 %v639, %v661
    %v684 = vadd.f32 %v640, %v657
    %v685 = vadd.f32 %v641, %v661
    %v686 = vadd.f32 %v642, %v657
    %v687 = vadd.f32 %v643, %v661
    %v688 = vadd.f32 %v644, %v657
    %v689 = vadd.f32 %v645, %v661
    %v690 = vadd.f32 %v646, %v657
    %v691 = vadd.f32 %v647, %v661
    %v692 = vadd.f32 %v648, %v657
    %v693 = vadd.f32 %v649, %v661
    %v694 = vadd.f32 %v650, %v657
    %v695 = vadd.f32 %v651, %v661
    %v696 = vmax.f32 %v664, 0.0
    %v697 = vmax.f32 %v665, 0.0
    %v698 = vmax.f32 %v666, 0.0
    %v699 = vmax.f32 %v667, 0.0
    %v700 = vmax.f32 %v668, 0.0
    %v701 = vmax.f32 %v669, 0.0
    %v702 = vmax.f32 %v670, 0.0
    %v703 = vmax.f32 %v671, 0.0
    %v704 = vmax.f32 %v672, 0.0
    %v705 = vmax.f32 %v673, 0.0
    %v706 = vmax.f32 %v674, 0.0
    %v707 = vmax.f32 %v675, 0.0
    %v708 = vmax.f32 %v676, 0.0
    %v709 = vmax.f32 %v677, 0.0
    %v710 = vmax.f32 %v678, 0.0
    %v711 = vmax.f32 %v679, 0.0
    %v712 = vmax.f32 %v680, 0.0
    %v713 = vmax.f32 %v681, 0.0
    %v714 = vmax.f32 %v682, 0.0
    %v715 = vmax.f32 %v683, 0.0
    %v716 = vmax.f32 %v684, 0.0
    %v717 = vmax.f32 %v685, 0.0
    %v718 = vmax.f32 %v686, 0.0
    %v719 = vmax.f32 %v687, 0.0
    %v720 = vmax.f32 %v688, 0.0
    %v721 = vmax.f32 %v689, 0.0
    %v722 = vmax.f32 %v690, 0.0
    %v723 = vmax.f32 %v691, 0.0
    %v724 = vmax.f32 %v692, 0.0
    %v725 = vmax.f32 %v693, 0.0
    %v726 = vmax.f32 %v694, 0.0
    %v727 = vmax.f32 %v695, 0.0
    %v728 = vpack.c.bf16 %v698, %v696
    %v729 = vpack.c.bf16 %v699, %v697
    %v730 = vpack.c.bf16 %v702, %v700
    %v731 = vpack.c.bf16 %v703, %v701
    %v732 = vpack.c.bf16 %v706, %v704
    %v733 = vpack.c.bf16 %v707, %v705
    %v734 = vpack.c.bf16 %v710, %v708
    %v735 = vpack.c.bf16 %v711, %v709
    %v736 = vpack.c.bf16 %v714, %v712
    %v737 = vpack.c.bf16 %v715, %v713
    %v738 = vpack.c.bf16 %v718, %v716
    %v739 = vpack.c.bf16 %v719, %v717
    %v740 = vpack.c.bf16 %v722, %v720
    %v741 = vpack.c.bf16 %v723, %v721
    %v742 = vpack.c.bf16 %v726, %v724
    %v743 = vpack.c.bf16 %v727, %v725
    %v744 = vld [vmem:[%s3] sm:$0xf]
    %v745 = vld [vmem:[%s3 + $0x4] sm:$0xf]
    %v746 = vld [vmem:[%s3 + $0x8] sm:$0xf]
    %v747 = vld [vmem:[%s3 + $0xc] sm:$0xf]
    %v748 = vld [vmem:[%s3 + $0x10] sm:$0xf]
    %v749 = vld [vmem:[%s3 + $0x14] sm:$0xf]
    %v750 = vld [vmem:[%s3 + $0x18] sm:$0xf]
    %v751 = vld [vmem:[%s3 + $0x1c] sm:$0xf]
    %v752 = vld [vmem:[%s3 + $0x20] sm:$0xf]
    %v753 = vld [vmem:[%s3 + $0x24] sm:$0xf]
    %v754 = vld [vmem:[%s3 + $0x28] sm:$0xf]
    %v755 = vld [vmem:[%s3 + $0x2c] sm:$0xf]
    %v756 = vld [vmem:[%s3 + $0x30] sm:$0xf]
    %v757 = vld [vmem:[%s3 + $0x34] sm:$0xf]
    %v758 = vld [vmem:[%s3 + $0x38] sm:$0xf]
    %v759 = vld [vmem:[%s3 + $0x3c] sm:$0xf]
    %v760 = vld [vmem:[%s3 + $0x40] sm:$0xf]
    %v761 = vld [vmem:[%s3 + $0x44] sm:$0xf]
    %v762 = vld [vmem:[%s3 + $0x48] sm:$0xf]
    %v763 = vld [vmem:[%s3 + $0x4c] sm:$0xf]
    %v764 = vld [vmem:[%s3 + $0x50] sm:$0xf]
    %v765 = vld [vmem:[%s3 + $0x54] sm:$0xf]
    %v766 = vld [vmem:[%s3 + $0x58] sm:$0xf]
    %v767 = vld [vmem:[%s3 + $0x5c] sm:$0xf]
    %v768 = vld [vmem:[%s3 + $0x60] sm:$0xf]
    %v769 = vld [vmem:[%s3 + $0x64] sm:$0xf]
    %v770 = vld [vmem:[%s3 + $0x68] sm:$0xf]
    %v771 = vld [vmem:[%s3 + $0x6c] sm:$0xf]
    %v772 = vld [vmem:[%s3 + $0x70] sm:$0xf]
    %v773 = vld [vmem:[%s3 + $0x74] sm:$0xf]
    %v774 = vld [vmem:[%s3 + $0x78] sm:$0xf]
    %v775 = vld [vmem:[%s3 + $0x7c] sm:$0xf]
    %v776 = vld [vmem:[%s4] sm:$0x1]
    %v778 = vlaneseq
    %v779 = vshrl.u32 %v778, 7
    %v780 = vsub.s32 0, %v779
    %v781 = vrot.slane %v776, %v780
    %v815 = vunpack.c.l.b16 %v744
    %v816 = vunpack.c.l.b16 %v745
    %v817 = vunpack.c.l.b16 %v746
    %v818 = vunpack.c.l.b16 %v747
    %v819 = vunpack.c.l.b16 %v748
    %v820 = vunpack.c.l.b16 %v749
    %v821 = vunpack.c.l.b16 %v750
    %v822 = vunpack.c.l.b16 %v751
    %v823 = vunpack.c.l.b16 %v752
    %v824 = vunpack.c.l.b16 %v753
    %v825 = vunpack.c.l.b16 %v754
    %v826 = vunpack.c.l.b16 %v755
    %v827 = vunpack.c.l.b16 %v756
    %v828 = vunpack.c.l.b16 %v757
    %v829 = vunpack.c.l.b16 %v758
    %v830 = vunpack.c.l.b16 %v759
    %v831 = vunpack.c.l.b16 %v760
    %v832 = vunpack.c.l.b16 %v761
    %v833 = vunpack.c.l.b16 %v762
    %v834 = vunpack.c.l.b16 %v763
    %v835 = vunpack.c.l.b16 %v764
    %v836 = vunpack.c.l.b16 %v765
    %v837 = vunpack.c.l.b16 %v766
    %v838 = vunpack.c.l.b16 %v767
    %v839 = vunpack.c.l.b16 %v768
    %v840 = vunpack.c.l.b16 %v769
    %v841 = vunpack.c.l.b16 %v770
    %v842 = vunpack.c.l.b16 %v771
    %v843 = vunpack.c.l.b16 %v772
    %v844 = vunpack.c.l.b16 %v773
    %v845 = vunpack.c.l.b16 %v774
    %v846 = vunpack.c.l.b16 %v775
    %v847 = vpack.c.b16 %v816, %v815
    %v848 = vpack.c.b16 %v818, %v817
    %v849 = vpack.c.b16 %v820, %v819
    %v850 = vpack.c.b16 %v822, %v821
    %v851 = vpack.c.b16 %v824, %v823
    %v852 = vpack.c.b16 %v826, %v825
    %v853 = vpack.c.b16 %v828, %v827
    %v854 = vpack.c.b16 %v830, %v829
    %v855 = vpack.c.b16 %v832, %v831
    %v856 = vpack.c.b16 %v834, %v833
    %v857 = vpack.c.b16 %v836, %v835
    %v858 = vpack.c.b16 %v838, %v837
    %v859 = vpack.c.b16 %v840, %v839
    %v860 = vpack.c.b16 %v842, %v841
    %v861 = vpack.c.b16 %v844, %v843
    %v862 = vpack.c.b16 %v846, %v845
    %879 = vmatprep.subr.bf16.mxu0 0
    %880 = vmatpush1.bf16.msra.mxu0 %v847
    %881 = vmatprep.subr.bf16.mxu0 0
    %882 = vmatpush1.bf16.msra.mxu0 %v848
    %883 = vmatprep.subr.bf16.mxu0 0
    %884 = vmatpush1.bf16.msra.mxu0 %v849
    %885 = vmatprep.subr.bf16.mxu0 0
    %886 = vmatpush1.bf16.msra.mxu0 %v850
    %887 = vmatprep.subr.bf16.mxu0 0
    %888 = vmatpush1.bf16.msra.mxu0 %v851
    %889 = vmatprep.subr.bf16.mxu0 0
    %890 = vmatpush1.bf16.msra.mxu0 %v852
    %891 = vmatprep.subr.bf16.mxu0 0
    %892 = vmatpush1.bf16.msra.mxu0 %v853
    %893 = vmatprep.subr.bf16.mxu0 0
    %894 = vmatpush1.bf16.msra.mxu0 %v854
    %895 = vmatprep.subr.bf16.mxu0 0
    %896 = vmatpush1.bf16.msra.mxu0 %v855
    %897 = vmatprep.subr.bf16.mxu0 0
    %898 = vmatpush1.bf16.msra.mxu0 %v856
    %899 = vmatprep.subr.bf16.mxu0 0
    %900 = vmatpush1.bf16.msra.mxu0 %v857
    %901 = vmatprep.subr.bf16.mxu0 0
    %902 = vmatpush1.bf16.msra.mxu0 %v858
    %903 = vmatprep.subr.bf16.mxu0 0
    %904 = vmatpush1.bf16.msra.mxu0 %v859
    %905 = vmatprep.subr.bf16.mxu0 0
    %906 = vmatpush1.bf16.msra.mxu0 %v860
    %907 = vmatprep.subr.bf16.mxu0 0
    %908 = vmatpush1.bf16.msra.mxu0 %v861
    %909 = vmatprep.subr.bf16.mxu0 0
    %910 = vmatpush1.bf16.msra.mxu0 %v862
    %911 = vmatprep.mubr.bf16.mxu0 %v729
    %912 = vmatmul.mubr.bf16.gmra.mrb[0].mxu0 %v728
    %v913 = vpop.f32.mrb[0].mxu0
    %v914 = vadd.f32 %v781, %v913
    %v915 = vpop.f32.mrb[0].mxu0
    %v916 = vpop.f32.mrb[0].mxu0
    %v917 = vadd.f32 %v781, %v916
    %v918 = vpop.f32.mrb[0].mxu0
    %919 = vmatprep.mubr.bf16.mxu0 %v731
    %920 = vmatmul.mubr.bf16.gmra.mrb[0].mxu0 %v730
    %v921 = vpop.f32.mrb[0].mxu0
    %v922 = vadd.f32 %v781, %v921
    %v923 = vpop.f32.mrb[0].mxu0
    %v924 = vpop.f32.mrb[0].mxu0
    %v925 = vadd.f32 %v781, %v924
    %v926 = vpop.f32.mrb[0].mxu0
    %927 = vmatprep.mubr.bf16.mxu0 %v733
    %928 = vmatmul.mubr.bf16.gmra.mrb[0].mxu0 %v732
    %v929 = vpop.f32.mrb[0].mxu0
    %v930 = vadd.f32 %v781, %v929
    %v931 = vpop.f32.mrb[0].mxu0
    %v932 = vpop.f32.mrb[0].mxu0
    %v933 = vadd.f32 %v781, %v932
    %v934 = vpop.f32.mrb[0].mxu0
    %935 = vmatprep.mubr.bf16.mxu0 %v735
    %936 = vmatmul.mubr.bf16.gmra.mrb[0].mxu0 %v734
    %v937 = vpop.f32.mrb[0].mxu0
    %v938 = vadd.f32 %v781, %v937
    %v939 = vpop.f32.mrb[0].mxu0
    %v940 = vpop.f32.mrb[0].mxu0
    %v941 = vadd.f32 %v781, %v940
    %v942 = vpop.f32.mrb[0].mxu0
    %943 = vmatprep.mubr.bf16.mxu0 %v737
    %944 = vmatmul.mubr.bf16.gmra.mrb[0].mxu0 %v736
    %v945 = vpop.f32.mrb[0].mxu0
    %v946 = vadd.f32 %v781, %v945
    %v947 = vpop.f32.mrb[0].mxu0
    %v948 = vpop.f32.mrb[0].mxu0
    %v949 = vadd.f32 %v781, %v948
    %v950 = vpop.f32.mrb[0].mxu0
    %951 = vmatprep.mubr.bf16.mxu0 %v739
    %952 = vmatmul.mubr.bf16.gmra.mrb[0].mxu0 %v738
    %v953 = vpop.f32.mrb[0].mxu0
    %v954 = vadd.f32 %v781, %v953
    %v955 = vpop.f32.mrb[0].mxu0
    %v956 = vpop.f32.mrb[0].mxu0
    %v957 = vadd.f32 %v781, %v956
    %v958 = vpop.f32.mrb[0].mxu0
    %959 = vmatprep.mubr.bf16.mxu0 %v741
    %960 = vmatmul.mubr.bf16.gmra.mrb[0].mxu0 %v740
    %v961 = vpop.f32.mrb[0].mxu0
    %v962 = vadd.f32 %v781, %v961
    %v963 = vpop.f32.mrb[0].mxu0
    %v964 = vpop.f32.mrb[0].mxu0
    %v965 = vadd.f32 %v781, %v964
    %v966 = vpop.f32.mrb[0].mxu0
    %967 = vmatprep.mubr.bf16.mxu0 %v743
    %968 = vmatmul.mubr.bf16.gmra.mrb[0].mxu0 %v742
    %v969 = vpop.f32.mrb[0].mxu0
    %v970 = vadd.f32 %v781, %v969
    %v971 = vpop.f32.mrb[0].mxu0
    %v972 = vpop.f32.mrb[0].mxu0
    %v973 = vadd.f32 %v781, %v972
    %v974 = vpop.f32.mrb[0].mxu0
    %975 = vdwg.mxu0
    %v976 = vmax.f32 %v914, 0.0
    %v977 = vmax.f32 %v917, 0.0
    %v978 = vmax.f32 %v922, 0.0
    %v979 = vmax.f32 %v925, 0.0
    %v980 = vmax.f32 %v930, 0.0
    %v981 = vmax.f32 %v933, 0.0
    %v982 = vmax.f32 %v938, 0.0
    %v983 = vmax.f32 %v941, 0.0
    %v984 = vmax.f32 %v946, 0.0
    %v985 = vmax.f32 %v949, 0.0
    %v986 = vmax.f32 %v954, 0.0
    %v987 = vmax.f32 %v957, 0.0
    %v988 = vmax.f32 %v962, 0.0
    %v989 = vmax.f32 %v965, 0.0
    %v990 = vmax.f32 %v970, 0.0
    %v991 = vmax.f32 %v973, 0.0
    %v992 = vpack.c.bf16 %v977, %v976
    %v993 = vpack.c.bf16 %v979, %v978
    %v994 = vpack.c.bf16 %v981, %v980
    %v995 = vpack.c.bf16 %v983, %v982
    %v996 = vpack.c.bf16 %v985, %v984
    %v997 = vpack.c.bf16 %v987, %v986
    %v998 = vpack.c.bf16 %v989, %v988
    %v999 = vpack.c.bf16 %v991, %v990
    %v1000 = vld [vmem:[%s5] sm:$0xf]
    %v1001 = vld [vmem:[%s5 + $0x4] sm:$0xf]
    %v1002 = vld [vmem:[%s5 + $0x8] sm:$0xf]
    %v1003 = vld [vmem:[%s5 + $0xc] sm:$0xf]
    %v1004 = vld [vmem:[%s5 + $0x10] sm:$0xf]
    %v1005 = vld [vmem:[%s5 + $0x14] sm:$0xf]
    %v1006 = vld [vmem:[%s5 + $0x18] sm:$0xf]
    %v1007 = vld [vmem:[%s5 + $0x1c] sm:$0xf]
    %v1008 = vld [vmem:[%s5 + $0x20] sm:$0xf]
    %v1009 = vld [vmem:[%s5 + $0x24] sm:$0xf]
    %v1010 = vld [vmem:[%s5 + $0x28] sm:$0xf]
    %v1011 = vld [vmem:[%s5 + $0x2c] sm:$0xf]
    %v1012 = vld [vmem:[%s5 + $0x30] sm:$0xf]
    %v1013 = vld [vmem:[%s5 + $0x34] sm:$0xf]
    %v1014 = vld [vmem:[%s5 + $0x38] sm:$0xf]
    %v1015 = vld [vmem:[%s5 + $0x3c] sm:$0xf]
    %v1016 = vld [vmem:[%s6] sm:$0x1]
    %v1018 = vlaneseq
    %v1019 = vshrl.u32 %v1018, 7
    %v1020 = vsub.s32 0, %v1019
    %v1021 = vrot.slane %v1016, %v1020
    %v1039 = vunpack.c.l.b16 %v1000
    %v1040 = vunpack.c.l.b16 %v1001
    %v1041 = vunpack.c.l.b16 %v1002
    %v1042 = vunpack.c.l.b16 %v1003
    %v1043 = vunpack.c.l.b16 %v1004
    %v1044 = vunpack.c.l.b16 %v1005
    %v1045 = vunpack.c.l.b16 %v1006
    %v1046 = vunpack.c.l.b16 %v1007
    %v1047 = vunpack.c.l.b16 %v1008
    %v1048 = vunpack.c.l.b16 %v1009
    %v1049 = vunpack.c.l.b16 %v1010
    %v1050 = vunpack.c.l.b16 %v1011
    %v1051 = vunpack.c.l.b16 %v1012
    %v1052 = vunpack.c.l.b16 %v1013
    %v1053 = vunpack.c.l.b16 %v1014
    %v1054 = vunpack.c.l.b16 %v1015
    %v1055 = vpack.c.b16 %v1040, %v1039
    %v1056 = vpack.c.b16 %v1042, %v1041
    %v1057 = vpack.c.b16 %v1044, %v1043
    %v1058 = vpack.c.b16 %v1046, %v1045
    %v1059 = vpack.c.b16 %v1048, %v1047
    %v1060 = vpack.c.b16 %v1050, %v1049
    %v1061 = vpack.c.b16 %v1052, %v1051
    %v1062 = vpack.c.b16 %v1054, %v1053
    %1071 = vmatprep.subr.bf16.mxu0 0
    %1072 = vmatpush1.bf16.msra.mxu0 %v1055
    %1073 = vmatprep.subr.bf16.mxu0 0
    %1074 = vmatpush1.bf16.msra.mxu0 %v1056
    %1075 = vmatprep.subr.bf16.mxu0 0
    %1076 = vmatpush1.bf16.msra.mxu0 %v1057
    %1077 = vmatprep.subr.bf16.mxu0 0
    %1078 = vmatpush1.bf16.msra.mxu0 %v1058
    %1079 = vmatprep.subr.bf16.mxu0 0
    %1080 = vmatpush1.bf16.msra.mxu0 %v1059
    %1081 = vmatprep.subr.bf16.mxu0 0
    %1082 = vmatpush1.bf16.msra.mxu0 %v1060
    %1083 = vmatprep.subr.bf16.mxu0 0
    %1084 = vmatpush1.bf16.msra.mxu0 %v1061
    %1085 = vmatprep.subr.bf16.mxu0 0
    %1086 = vmatpush1.bf16.msra.mxu0 %v1062
    %1087 = vmatprep.subr.bf16.mxu0 0
    %1088 = vmatpush1.bf16.msra.mxu0 0
    %1089 = vmatprep.subr.bf16.mxu0 0
    %1090 = vmatpush1.bf16.msra.mxu0 0
    %1091 = vmatprep.subr.bf16.mxu0 0
    %1092 = vmatpush1.bf16.msra.mxu0 0
    %1093 = vmatprep.subr.bf16.mxu0 0
    %1094 = vmatpush1.bf16.msra.mxu0 0
    %1095 = vmatprep.subr.bf16.mxu0 0
    %1096 = vmatpush1.bf16.msra.mxu0 0
    %1097 = vmatprep.subr.bf16.mxu0 0
    %1098 = vmatpush1.bf16.msra.mxu0 0
    %1099 = vmatprep.subr.bf16.mxu0 0
    %1100 = vmatpush1.bf16.msra.mxu0 0
    %1101 = vmatprep.subr.bf16.mxu0 0
    %1102 = vmatpush1.bf16.msra.mxu0 0
    %1103 = vmatprep.mubr.bf16.mxu0 0
    %1104 = vmatmul.mubr.bf16.gmra.mrb[0].mxu0 %v992
    %v1105 = vpop.f32.mrb[0].mxu0
    %v1106 = vadd.f32 %v1021, %v1105
    %v1107 = vpop.f32.mrb[0].mxu0
    %v1108 = vpop.f32.mrb[0].mxu0
    %v1109 = vadd.f32 %v1021, %v1108
    %v1110 = vpop.f32.mrb[0].mxu0
    %1111 = vmatprep.mubr.bf16.mxu0 0
    %1112 = vmatmul.mubr.bf16.gmra.mrb[0].mxu0 %v993
    %v1113 = vpop.f32.mrb[0].mxu0
    %v1114 = vadd.f32 %v1021, %v1113
    %v1115 = vpop.f32.mrb[0].mxu0
    %v1116 = vpop.f32.mrb[0].mxu0
    %v1117 = vadd.f32 %v1021, %v1116
    %v1118 = vpop.f32.mrb[0].mxu0
    %1119 = vmatprep.mubr.bf16.mxu0 0
    %1120 = vmatmul.mubr.bf16.gmra.mrb[0].mxu0 %v994
    %v1121 = vpop.f32.mrb[0].mxu0
    %v1122 = vadd.f32 %v1021, %v1121
    %v1123 = vpop.f32.mrb[0].mxu0
    %v1124 = vpop.f32.mrb[0].mxu0
    %v1125 = vadd.f32 %v1021, %v1124
    %v1126 = vpop.f32.mrb[0].mxu0
    %1127 = vmatprep.mubr.bf16.mxu0 0
    %1128 = vmatmul.mubr.bf16.gmra.mrb[0].mxu0 %v995
    %v1129 = vpop.f32.mrb[0].mxu0
    %v1130 = vadd.f32 %v1021, %v1129
    %v1131 = vpop.f32.mrb[0].mxu0
    %v1132 = vpop.f32.mrb[0].mxu0
    %v1133 = vadd.f32 %v1021, %v1132
    %v1134 = vpop.f32.mrb[0].mxu0
    %1135 = vmatprep.mubr.bf16.mxu0 0
    %1136 = vmatmul.mubr.bf16.gmra.mrb[0].mxu0 %v996
    %v1137 = vpop.f32.mrb[0].mxu0
    %v1138 = vadd.f32 %v1021, %v1137
    %v1139 = vpop.f32.mrb[0].mxu0
    %v1140 = vpop.f32.mrb[0].mxu0
    %v1141 = vadd.f32 %v1021, %v1140
    %v1142 = vpop.f32.mrb[0].mxu0
    %1143 = vmatprep.mubr.bf16.mxu0 0
    %1144 = vmatmul.mubr.bf16.gmra.mrb[0].mxu0 %v997
    %v1145 = vpop.f32.mrb[0].mxu0
    %v1146 = vadd.f32 %v1021, %v1145
    %v1147 = vpop.f32.mrb[0].mxu0
    %v1148 = vpop.f32.mrb[0].mxu0
    %v1149 = vadd.f32 %v1021, %v1148
    %v1150 = vpop.f32.mrb[0].mxu0
    %1151 = vmatprep.mubr.bf16.mxu0 0
    %1152 = vmatmul.mubr.bf16.gmra.mrb[0].mxu0 %v998
    %v1153 = vpop.f32.mrb[0].mxu0
    %v1154 = vadd.f32 %v1021, %v1153
    %v1155 = vpop.f32.mrb[0].mxu0
    %v1156 = vpop.f32.mrb[0].mxu0
    %v1157 = vadd.f32 %v1021, %v1156
    %v1158 = vpop.f32.mrb[0].mxu0
    %1159 = vmatprep.mubr.bf16.mxu0 0
    %1160 = vmatmul.mubr.bf16.gmra.mrb[0].mxu0 %v999
    %v1161 = vpop.f32.mrb[0].mxu0
    %v1162 = vadd.f32 %v1021, %v1161
    %v1163 = vpop.f32.mrb[0].mxu0
    %v1164 = vpop.f32.mrb[0].mxu0
    %v1165 = vadd.f32 %v1021, %v1164
    %v1166 = vpop.f32.mrb[0].mxu0
    %1167 = vdwg.mxu0
    %v1168 = vmax.f32 %v1106, 0.0
    %v1169 = vmax.f32 %v1109, 0.0
    %v1170 = vmax.f32 %v1114, 0.0
    %v1171 = vmax.f32 %v1117, 0.0
    %v1172 = vmax.f32 %v1122, 0.0
    %v1173 = vmax.f32 %v1125, 0.0
    %v1174 = vmax.f32 %v1130, 0.0
    %v1175 = vmax.f32 %v1133, 0.0
    %v1176 = vmax.f32 %v1138, 0.0
    %v1177 = vmax.f32 %v1141, 0.0
    %v1178 = vmax.f32 %v1146, 0.0
    %v1179 = vmax.f32 %v1149, 0.0
    %v1180 = vmax.f32 %v1154, 0.0
    %v1181 = vmax.f32 %v1157, 0.0
    %v1182 = vmax.f32 %v1162, 0.0
    %v1183 = vmax.f32 %v1165, 0.0
    %v1184 = vpack.c.bf16 %v1169, %v1168
    %v1185 = vpack.c.bf16 %v1171, %v1170
    %v1186 = vpack.c.bf16 %v1173, %v1172
    %v1187 = vpack.c.bf16 %v1175, %v1174
    %v1188 = vpack.c.bf16 %v1177, %v1176
    %v1189 = vpack.c.bf16 %v1179, %v1178
    %v1190 = vpack.c.bf16 %v1181, %v1180
    %v1191 = vpack.c.bf16 %v1183, %v1182
    %v1192 = vld [vmem:[%s7] sm:$0xf]
    %v1193 = vld [vmem:[%s7 + $0x4] sm:$0xf]
    %v1194 = vld [vmem:[%s7 + $0x8] sm:$0xf]
    %v1195 = vld [vmem:[%s7 + $0xc] sm:$0xf]
    %v1196 = vld [vmem:[%s7 + $0x10] sm:$0xf]
    %v1197 = vld [vmem:[%s7 + $0x14] sm:$0xf]
    %v1198 = vld [vmem:[%s7 + $0x18] sm:$0xf]
    %v1199 = vld [vmem:[%s7 + $0x1c] sm:$0xf]
    %v1200 = vld [vmem:[%s7 + $0x20] sm:$0xf]
    %v1201 = vld [vmem:[%s7 + $0x24] sm:$0xf]
    %v1202 = vld [vmem:[%s7 + $0x28] sm:$0xf]
    %v1203 = vld [vmem:[%s7 + $0x2c] sm:$0xf]
    %v1204 = vld [vmem:[%s7 + $0x30] sm:$0xf]
    %v1205 = vld [vmem:[%s7 + $0x34] sm:$0xf]
    %v1206 = vld [vmem:[%s7 + $0x38] sm:$0xf]
    %v1207 = vld [vmem:[%s7 + $0x3c] sm:$0xf]
    %v1208 = vld [vmem:[%s8] sm:$0x1]
    %v1210 = vlaneseq
    %v1211 = vshrl.u32 %v1210, 7
    %v1212 = vsub.s32 0, %v1211
    %v1213 = vrot.slane %v1208, %v1212
    %v1231 = vunpack.c.l.b16 %v1192
    %v1232 = vunpack.c.l.b16 %v1193
    %v1233 = vunpack.c.l.b16 %v1194
    %v1234 = vunpack.c.l.b16 %v1195
    %v1235 = vunpack.c.l.b16 %v1196
    %v1236 = vunpack.c.l.b16 %v1197
    %v1237 = vunpack.c.l.b16 %v1198
    %v1238 = vunpack.c.l.b16 %v1199
    %v1239 = vunpack.c.l.b16 %v1200
    %v1240 = vunpack.c.l.b16 %v1201
    %v1241 = vunpack.c.l.b16 %v1202
    %v1242 = vunpack.c.l.b16 %v1203
    %v1243 = vunpack.c.l.b16 %v1204
    %v1244 = vunpack.c.l.b16 %v1205
    %v1245 = vunpack.c.l.b16 %v1206
    %v1246 = vunpack.c.l.b16 %v1207
    %v1247 = vpack.c.b16 %v1232, %v1231
    %v1248 = vpack.c.b16 %v1234, %v1233
    %v1249 = vpack.c.b16 %v1236, %v1235
    %v1250 = vpack.c.b16 %v1238, %v1237
    %v1251 = vpack.c.b16 %v1240, %v1239
    %v1252 = vpack.c.b16 %v1242, %v1241
    %v1253 = vpack.c.b16 %v1244, %v1243
    %v1254 = vpack.c.b16 %v1246, %v1245
    %1263 = vmatprep.subr.bf16.mxu0 0
    %1264 = vmatpush1.bf16.msra.mxu0 %v1247
    %1265 = vmatprep.subr.bf16.mxu0 0
    %1266 = vmatpush1.bf16.msra.mxu0 %v1248
    %1267 = vmatprep.subr.bf16.mxu0 0
    %1268 = vmatpush1.bf16.msra.mxu0 %v1249
    %1269 = vmatprep.subr.bf16.mxu0 0
    %1270 = vmatpush1.bf16.msra.mxu0 %v1250
    %1271 = vmatprep.subr.bf16.mxu0 0
    %1272 = vmatpush1.bf16.msra.mxu0 %v1251
    %1273 = vmatprep.subr.bf16.mxu0 0
    %1274 = vmatpush1.bf16.msra.mxu0 %v1252
    %1275 = vmatprep.subr.bf16.mxu0 0
    %1276 = vmatpush1.bf16.msra.mxu0 %v1253
    %1277 = vmatprep.subr.bf16.mxu0 0
    %1278 = vmatpush1.bf16.msra.mxu0 %v1254
    %1279 = vmatprep.subr.bf16.mxu0 0
    %1280 = vmatpush1.bf16.msra.mxu0 0
    %1281 = vmatprep.subr.bf16.mxu0 0
    %1282 = vmatpush1.bf16.msra.mxu0 0
    %1283 = vmatprep.subr.bf16.mxu0 0
    %1284 = vmatpush1.bf16.msra.mxu0 0
    %1285 = vmatprep.subr.bf16.mxu0 0
    %1286 = vmatpush1.bf16.msra.mxu0 0
    %1287 = vmatprep.subr.bf16.mxu0 0
    %1288 = vmatpush1.bf16.msra.mxu0 0
    %1289 = vmatprep.subr.bf16.mxu0 0
    %1290 = vmatpush1.bf16.msra.mxu0 0
    %1291 = vmatprep.subr.bf16.mxu0 0
    %1292 = vmatpush1.bf16.msra.mxu0 0
    %1293 = vmatprep.subr.bf16.mxu0 0
    %1294 = vmatpush1.bf16.msra.mxu0 0
    %1295 = vmatprep.mubr.bf16.mxu0 0
    %1296 = vmatmul.mubr.bf16.gmra.mrb[0].mxu0 %v1184
    %v1297 = vpop.f32.mrb[0].mxu0
    %v1298 = vadd.f32 %v1213, %v1297
    %v1299 = vpop.f32.mrb[0].mxu0
    %v1300 = vpop.f32.mrb[0].mxu0
    %v1301 = vadd.f32 %v1213, %v1300
    %v1302 = vpop.f32.mrb[0].mxu0
    %1303 = vmatprep.mubr.bf16.mxu0 0
    %1304 = vmatmul.mubr.bf16.gmra.mrb[0].mxu0 %v1185
    %v1305 = vpop.f32.mrb[0].mxu0
    %v1306 = vadd.f32 %v1213, %v1305
    %v1307 = vpop.f32.mrb[0].mxu0
    %v1308 = vpop.f32.mrb[0].mxu0
    %v1309 = vadd.f32 %v1213, %v1308
    %v1310 = vpop.f32.mrb[0].mxu0
    %1311 = vmatprep.mubr.bf16.mxu0 0
    %1312 = vmatmul.mubr.bf16.gmra.mrb[0].mxu0 %v1186
    %v1313 = vpop.f32.mrb[0].mxu0
    %v1314 = vadd.f32 %v1213, %v1313
    %v1315 = vpop.f32.mrb[0].mxu0
    %v1316 = vpop.f32.mrb[0].mxu0
    %v1317 = vadd.f32 %v1213, %v1316
    %v1318 = vpop.f32.mrb[0].mxu0
    %1319 = vmatprep.mubr.bf16.mxu0 0
    %1320 = vmatmul.mubr.bf16.gmra.mrb[0].mxu0 %v1187
    %v1321 = vpop.f32.mrb[0].mxu0
    %v1322 = vadd.f32 %v1213, %v1321
    %v1323 = vpop.f32.mrb[0].mxu0
    %v1324 = vpop.f32.mrb[0].mxu0
    %v1325 = vadd.f32 %v1213, %v1324
    %v1326 = vpop.f32.mrb[0].mxu0
    %1327 = vmatprep.mubr.bf16.mxu0 0
    %1328 = vmatmul.mubr.bf16.gmra.mrb[0].mxu0 %v1188
    %v1329 = vpop.f32.mrb[0].mxu0
    %v1330 = vadd.f32 %v1213, %v1329
    %v1331 = vpop.f32.mrb[0].mxu0
    %v1332 = vpop.f32.mrb[0].mxu0
    %v1333 = vadd.f32 %v1213, %v1332
    %v1334 = vpop.f32.mrb[0].mxu0
    %1335 = vmatprep.mubr.bf16.mxu0 0
    %1336 = vmatmul.mubr.bf16.gmra.mrb[0].mxu0 %v1189
    %v1337 = vpop.f32.mrb[0].mxu0
    %v1338 = vadd.f32 %v1213, %v1337
    %v1339 = vpop.f32.mrb[0].mxu0
    %v1340 = vpop.f32.mrb[0].mxu0
    %v1341 = vadd.f32 %v1213, %v1340
    %v1342 = vpop.f32.mrb[0].mxu0
    %1343 = vmatprep.mubr.bf16.mxu0 0
    %1344 = vmatmul.mubr.bf16.gmra.mrb[0].mxu0 %v1190
    %v1345 = vpop.f32.mrb[0].mxu0
    %v1346 = vadd.f32 %v1213, %v1345
    %v1347 = vpop.f32.mrb[0].mxu0
    %v1348 = vpop.f32.mrb[0].mxu0
    %v1349 = vadd.f32 %v1213, %v1348
    %v1350 = vpop.f32.mrb[0].mxu0
    %1351 = vmatprep.mubr.bf16.mxu0 0
    %1352 = vmatmul.mubr.bf16.gmra.mrb[0].mxu0 %v1191
    %v1353 = vpop.f32.mrb[0].mxu0
    %v1354 = vadd.f32 %v1213, %v1353
    %v1355 = vpop.f32.mrb[0].mxu0
    %v1356 = vpop.f32.mrb[0].mxu0
    %v1357 = vadd.f32 %v1213, %v1356
    %v1358 = vpop.f32.mrb[0].mxu0
    %1359 = vdwg.mxu0
    %vm1360 = vcmask 146432
    %1361 = vst.msk [vmem:[#allocation2] sm:$0xff] %vm1360, %v1298
    %1362 = vst.msk [vmem:[#allocation2 + $0x8] sm:$0xff] %vm1360, %v1301
    %1363 = vst.msk [vmem:[#allocation2 + $0x10] sm:$0xff] %vm1360, %v1306
    %1364 = vst.msk [vmem:[#allocation2 + $0x18] sm:$0xff] %vm1360, %v1309
    %1365 = vst.msk [vmem:[#allocation2 + $0x20] sm:$0xff] %vm1360, %v1314
    %1366 = vst.msk [vmem:[#allocation2 + $0x28] sm:$0xff] %vm1360, %v1317
    %1367 = vst.msk [vmem:[#allocation2 + $0x30] sm:$0xff] %vm1360, %v1322
    %1368 = vst.msk [vmem:[#allocation2 + $0x38] sm:$0xff] %vm1360, %v1325
    %1369 = vst.msk [vmem:[#allocation2 + $0x40] sm:$0xff] %vm1360, %v1330
    %1370 = vst.msk [vmem:[#allocation2 + $0x48] sm:$0xff] %vm1360, %v1333
    %1371 = vst.msk [vmem:[#allocation2 + $0x50] sm:$0xff] %vm1360, %v1338
    %1372 = vst.msk [vmem:[#allocation2 + $0x58] sm:$0xff] %vm1360, %v1341
    %1373 = vst.msk [vmem:[#allocation2 + $0x60] sm:$0xff] %vm1360, %v1346
    %1374 = vst.msk [vmem:[#allocation2 + $0x68] sm:$0xff] %vm1360, %v1349
    %1375 = vst.msk [vmem:[#allocation2 + $0x70] sm:$0xff] %vm1360, %v1354
    %1376 = vst.msk [vmem:[#allocation2 + $0x78] sm:$0xff] %vm1360, %v1357
    // Predicated region
    $region38: #{dqn_ram_forward.1} parent=1 // pred_check
      _
    $region39: #{dqn_ram_forward.1} parent=1 // pred_check_branch
      %1378 = sbr.rel (0) target = $region41
    $region40: #{dqn_ram_forward.1} parent=1 // pred_region
      %s1380 = ssub.s32 2048, 32
      %1381 = vsyncadd [#allocation3], %s1380
      %s1382 = sshll.u32 [#allocation2], 4
      %s1383 = int_to_ptr.vmem [resolvable:$true] %s1382
      %1388 = dma.vmem_to_hbm [thread:$0]  %s1383, 32, %s9, [#allocation3], 32, 32, 2
    $region41: #{dqn_ram_forward.1} parent=1 // pred_fallthru
      _
    // Predicated region
    $region42: #{dqn_ram_forward.1} parent=1 // pred_check
      _
    $region43: #{dqn_ram_forward.1} parent=1 // pred_check_branch
      %1390 = sbr.rel (0) target = $region45
    $region44: #{dqn_ram_forward.1} parent=1 // pred_region
      %1391 = dma.done [#allocation3], 2048
    $region45: #{dqn_ram_forward.1} parent=1 // pred_fallthru
      _
    %1392 = vsyncpa [#allocation3], 1

</llo_original>
